<compile_context>
chip_gen: v7x
topology: tpu7x:2x2x1
jax: 0.10.0
libtpu: 0.0.40
codegen_flags: <defaults>
</compile_context>

<pallas_src>
import functools

import jax
import jax.numpy as jnp
from jax.experimental import pallas as pl
from jax.experimental.pallas import tpu as pltpu


N_PAD = 128  # lane-dense fused output width (capsules + probs + padding)


# --------------------------------------------------------------------------
# Fused Pallas kernel: (patches @ W_fused) + bias, sigmoid on prob columns.
#   p_ref: [TM, K]      w_ref: [K, N_PAD]     b_ref: [1, N_PAD]
#   o_ref: [TM, N_PAD]
# Columns [0, c_out) are raw capsule outputs; columns >= c_out get sigmoid
# (only [c_out, c_out+num_caps) are consumed; padding columns are sliced off).
# --------------------------------------------------------------------------
def _fused_conv_kernel(p_ref, w_ref, b_ref, o_ref, *, c_out):
    y = jnp.dot(p_ref[...], w_ref[...], preferred_element_type=jnp.float32)
    y = y + b_ref[...]
    cols = jax.lax.broadcasted_iota(jnp.int32, y.shape, 1)
    o_ref[...] = jnp.where(cols >= c_out, jax.nn.sigmoid(y), y)


def _round_up(x, m):
    return ((x + m - 1) // m) * m


# --------------------------------------------------------------------------
# Glue: im2col + weight flattening (PyTorch conv2d semantics, stride=1, pad=0)
# --------------------------------------------------------------------------
def _im2col(x, kh, kw):
    # x: [B, C, H, W] -> patches: [B*Ho*Wo, C*kh*kw], columns ordered (c, ki, kj)
    B, C, H, W = x.shape
    Ho, Wo = H - kh + 1, W - kw + 1
    cols = []
    for ki in range(kh):
        for kj in range(kw):
            cols.append(x[:, :, ki:ki + Ho, kj:kj + Wo])        # [B, C, Ho, Wo]
    p = jnp.stack(cols, axis=2)                                 # [B, C, kh*kw, Ho, Wo]
    p = p.transpose(0, 3, 4, 1, 2)                              # [B, Ho, Wo, C, kh*kw]
    return p.reshape(B * Ho * Wo, C * kh * kw), Ho, Wo


def _flatten_weight(w):
    # w: [C_out, C_in, kh, kw] -> [C_in*kh*kw, C_out]  (matches im2col ordering)
    C_out = w.shape[0]
    return w.reshape(C_out, -1).T


def prepare_fused_params(conv_w, conv_b, conv1_w, conv1_b):
    """One-time fused-weight prep, hoisted out of the per-forward-call path."""
    w_fused = jnp.concatenate(
        [_flatten_weight(conv_w), _flatten_weight(conv1_w)], axis=1)       # [K, N]
    K, N = w_fused.shape
    assert N <= N_PAD
    w_p = jnp.pad(w_fused.astype(jnp.float32), ((0, 0), (0, N_PAD - N)))   # [K, 128]
    b_fused = jnp.concatenate([conv_b, conv1_b]).astype(jnp.float32)       # [N]
    b_p = jnp.pad(b_fused, (0, N_PAD - N)).reshape(1, N_PAD)               # [1, 128]
    return w_p, b_p


# --------------------------------------------------------------------------
# T_Caps forward
# --------------------------------------------------------------------------
@functools.partial(
    jax.jit,
    static_argnames=("output_channels", "capsule_size", "kernel_size", "grid_steps"))
def t_caps_forward(x, w_p, b_p, *, output_channels, capsule_size=9,
                   kernel_size=3, grid_steps=None):
    # x: [B, C_in, H, W] (NCHW, PyTorch convention)
    B = x.shape[0]
    c_out = output_channels
    num_caps = c_out // capsule_size
    N = c_out + num_caps                                        # consumed output columns
    K = w_p.shape[0]                                            # C_in*kh*kw (unpadded)

    patches, Ho, Wo = _im2col(x, kernel_size, kernel_size)      # [M, K] f32
    M = patches.shape[0]

    # Size TM to the real M.  Small problems: one grid step (no per-step
    # pipeline bubble, usually no M-pad at all since M % 8 == 0 here).
    # Large problems: 2 steps so v7x's two TensorCores both get a tile.
    if grid_steps is None:
        grid_steps = 1 if M <= 1024 else 2
    TM = _round_up(pl.cdiv(M, grid_steps), 8)
    M_PAD = TM * grid_steps
    if M_PAD != M:
        patches = jnp.pad(patches, ((0, M_PAD - M), (0, 0)))

    kernel = functools.partial(_fused_conv_kernel, c_out=c_out)
    cost = pl.CostEstimate(
        flops=2 * M_PAD * K * N_PAD,
        transcendentals=M_PAD * N_PAD,
        bytes_accessed=4 * (M_PAD * K + K * N_PAD + N_PAD + M_PAD * N_PAD))

    y = pl.pallas_call(
        kernel,
        out_shape=jax.ShapeDtypeStruct((M_PAD, N_PAD), jnp.float32),
        grid_spec=pltpu.PrefetchScalarGridSpec(
            num_scalar_prefetch=0,
            grid=(grid_steps,),
            in_specs=[
                pl.BlockSpec((TM, K), lambda i: (i, 0)),        # patches tile (K unpadded)
                pl.BlockSpec((K, N_PAD), lambda i: (0, 0)),     # fused weights (resident)
                pl.BlockSpec((1, N_PAD), lambda i: (0, 0)),     # fused bias (resident)
            ],
            out_specs=pl.BlockSpec((TM, N_PAD), lambda i: (i, 0)),
        ),
        compiler_params=pltpu.CompilerParams(
            dimension_semantics=("parallel",)),
        cost_estimate=cost,
    )(patches, w_p, b_p)

    # Final layout (required by the module's output contract): a single slice,
    # then the capsule/probability reshapes.  Probability split is a pure
    # contiguous column slice by construction.
    y = y[:M, :N].reshape(B, Ho, Wo, N)
    capsules = (y[..., :c_out]
                .reshape(B, Ho, Wo, num_caps, capsule_size)
                .transpose(0, 3, 1, 2, 4))                      # [B, num_caps, Ho, Wo, caps]
    probabilities = y[..., c_out:].transpose(0, 3, 1, 2)        # [B, num_caps, Ho, Wo]
    return capsules, probabilities


# --------------------------------------------------------------------------
# Pure-JAX reference (lax conv) for a correctness sanity check
# --------------------------------------------------------------------------
def t_caps_reference(x, conv_w, conv_b, conv1_w, conv1_b, capsule_size=9):
    dn = ("NCHW", "OIHW", "NCHW")
    out = jax.lax.conv_general_dilated(x, conv_w, (1, 1), "VALID",
                                       dimension_numbers=dn)
    out = out + conv_b[None, :, None, None]
    B, C, H, W = out.shape
    num_caps = C // capsule_size
    caps = out.reshape(B, num_caps, capsule_size, H, W).transpose(0, 1, 3, 4, 2)

    out1 = jax.lax.conv_general_dilated(x, conv1_w, (1, 1), "VALID",
                                        dimension_numbers=dn)
    probs = jax.nn.sigmoid(out1 + conv1_b[None, :, None, None])
    return caps, probs


# --------------------------------------------------------------------------
if __name__ == "__main__":
    # Small shapes consistent with the module:
    #   input_channels=4, output_channels=18 (divisible by Capsule_size=9),
    #   kernel_size=3, stride=1, padding=0  ->  num_caps=2
    B, C_in, H, W = 2, 4, 16, 16
    output_channels, capsule_size, ks = 18, 9, 3
    num_caps = output_channels // capsule_size

    key = jax.random.PRNGKey(0)
    kx, kw0, kb0, kw1, kb1 = jax.random.split(key, 5)

    x = jax.random.normal(kx, (B, C_in, H, W), dtype=jnp.float32)
    fan_in = C_in * ks * ks
    scale = 1.0 / jnp.sqrt(fan_in)
    conv_w = jax.random.uniform(kw0, (output_channels, C_in, ks, ks),
                                minval=-scale, maxval=scale, dtype=jnp.float32)
    conv_b = jax.random.uniform(kb0, (output_channels,),
                                minval=-scale, maxval=scale, dtype=jnp.float32)
    conv1_w = jax.random.uniform(kw1, (num_caps, C_in, ks, ks),
                                 minval=-scale, maxval=scale, dtype=jnp.float32)
    conv1_b = jax.random.uniform(kb1, (num_caps,),
                                 minval=-scale, maxval=scale, dtype=jnp.float32)

    # One-time weight prep (static across forward calls).
    w_p, b_p = prepare_fused_params(conv_w, conv_b, conv1_w, conv1_b)
    w_p, b_p = jax.block_until_ready((w_p, b_p))

    capsules, probabilities = t_caps_forward(
        x, w_p, b_p,
        output_channels=output_channels, capsule_size=capsule_size,
        kernel_size=ks)
    jax.block_until_ready((capsules, probabilities))

    # Sanity-check against the pure-JAX reference.
    caps_ref, probs_ref = t_caps_reference(x, conv_w, conv_b, conv1_w, conv1_b,
                                           capsule_size=capsule_size)
    assert capsules.shape == (B, num_caps, H - ks + 1, W - ks + 1, capsule_size)
    assert probabilities.shape == (B, num_caps, H - ks + 1, W - ks + 1)
    assert jnp.allclose(capsules, caps_ref, atol=1e-4, rtol=1e-4)
    assert jnp.allclose(probabilities, probs_ref, atol=1e-4, rtol=1e-4)

    print("KERNEL_OK")
</pallas_src>

<mosaic_0001>
module attributes {stable_mosaic.version = 11 : i64} {
  func.func @_fused_conv_kernel(%arg0: i32, %arg1: memref<392x36xf32, #tpu.memory_space<vmem>>, %arg2: memref<36x128xf32, #tpu.memory_space<vmem>>, %arg3: memref<1x128xf32, #tpu.memory_space<vmem>>, %arg4: memref<392x128xf32, #tpu.memory_space<vmem>>) attributes {dimension_semantics = [#tpu.dimension_semantics<parallel>], iteration_bounds = array<i64: 1>, scalar_prefetch = 0 : i64, scratch_operands = 0 : i64, tpu.core_type = #tpu.core_type<tc>, window_params = [{transform_indices = @transform_0, window_bounds = array<i64: 392, 36>}, {pipeline_mode = #tpu.pipeline_mode<synchronous>, transform_indices = @transform_1, window_bounds = array<i64: 36, 128>}, {pipeline_mode = #tpu.pipeline_mode<synchronous>, transform_indices = @transform_2, window_bounds = array<i64: 1, 128>}, {transform_indices = @transform_3, window_bounds = array<i64: 392, 128>}]} {
    %c0 = arith.constant 0 : index
    %c0_0 = arith.constant 0 : index
    %0 = vector.load %arg1[%c0, %c0_0] : memref<392x36xf32, #tpu.memory_space<vmem>>, vector<392x36xf32>
    %c0_1 = arith.constant 0 : index
    %c0_2 = arith.constant 0 : index
    %1 = vector.load %arg2[%c0_1, %c0_2] : memref<36x128xf32, #tpu.memory_space<vmem>>, vector<36x128xf32>
    %cst = arith.constant dense<0.000000e+00> : vector<392x128xf32>
    %2 = tpu.matmul %0, %1, %cst {dimension_numbers = #tpu.dot_dimension_numbers<[1], [0], [0], [1], [0, 0, 1, 1], [], []>} : vector<392x36xf32>, vector<36x128xf32>, vector<392x128xf32> -> vector<392x128xf32>
    %c0_3 = arith.constant 0 : index
    %c0_4 = arith.constant 0 : index
    %3 = vector.load %arg3[%c0_3, %c0_4] : memref<1x128xf32, #tpu.memory_space<vmem>>, vector<1x128xf32>
    %4 = vector.broadcast %3 : vector<1x128xf32> to vector<392x128xf32>
    %5 = arith.addf %2, %4 : vector<392x128xf32>
    %6 = tpu.iota {dimensions = array<i32: 1>} : vector<392x128xi32>
    %c18_i32 = arith.constant 18 : i32
    %7 = vector.broadcast %c18_i32 : i32 to vector<392x128xi32>
    %8 = arith.cmpi sge, %6, %7 : vector<392x128xi32>
    %9 = arith.negf %5 : vector<392x128xf32>
    %10 = math.exp %9 : vector<392x128xf32>
    %cst_5 = arith.constant 1.000000e+00 : f32
    %11 = vector.broadcast %cst_5 : f32 to vector<392x128xf32>
    %12 = arith.addf %11, %10 : vector<392x128xf32>
    %13 = arith.divf %11, %12 : vector<392x128xf32>
    %14 = arith.select %8, %13, %5 : vector<392x128xi1>, vector<392x128xf32>
    %c0_6 = arith.constant 0 : index
    %c0_7 = arith.constant 0 : index
    %15 = vector.load %arg4[%c0_6, %c0_7] : memref<392x128xf32, #tpu.memory_space<vmem>>, vector<392x128xf32>
    tpu.vector_store %arg4[%c0_6, %c0_7], %14 {strides = array<i32>} : memref<392x128xf32, #tpu.memory_space<vmem>>, vector<392x128xf32>,
    return
  }
  func.func @transform_0(%arg0: i32) -> (i32, i32) {
    %c0_i32 = arith.constant 0 : i32
    %c0_i32_0 = arith.constant 0 : i32
    return %arg0, %c0_i32 : i32, i32
  }
  func.func @transform_1(%arg0: i32) -> (i32, i32) {
    %c0_i32 = arith.constant 0 : i32
    %c0_i32_0 = arith.constant 0 : i32
    %c0_i32_1 = arith.constant 0 : i32
    return %c0_i32, %c0_i32_0 : i32, i32
  }
  func.func @transform_2(%arg0: i32) -> (i32, i32) {
    %c0_i32 = arith.constant 0 : i32
    %c0_i32_0 = arith.constant 0 : i32
    %c0_i32_1 = arith.constant 0 : i32
    return %c0_i32, %c0_i32_0 : i32, i32
  }
  func.func @transform_3(%arg0: i32) -> (i32, i32) {
    %c0_i32 = arith.constant 0 : i32
    %c0_i32_0 = arith.constant 0 : i32
    return %arg0, %c0_i32 : i32, i32
  }
}

</mosaic_0001>

<llo_original>
// kernel: t_caps_forward.1
$region0: #{t_caps_forward.1}
  #allocation0 [shape = 'u32[]', space=smem, size = 0x4, offset = 0x4, fixed_abs, tag = 'smem constant byte address 0x4 - core index']
  #allocation1 [shape = 'u32[144,128]{1,0:T(1,128)}', space=vmem, size = 0x12000, scoped, tag = 'internal scratch']
  %s0 = inlined_call_operand.vmem [shape: f32[392,36], index: 0, kind: input, shape index: {}]
  %s1 = inlined_call_operand.vmem [shape: f32[36,128], index: 1, kind: input, shape index: {}]
  %s2 = inlined_call_operand.vmem [shape: f32[1,128], index: 2, kind: input, shape index: {}]
  %s3 = inlined_call_operand.vmem [shape: f32[392,128], index: 3, kind: output, shape index: {}]
  %s4 = sld [smem:[#allocation0]]
  $region22: #{t_caps_forward.1} parent=0
    _
  %s6 = ssub.s32 1, %s4
  %s7 = scalar_select 0, %s6, %s4
  // Predicated region
  $region2: #{t_caps_forward.1} parent=0 // pred_check
    _
  $region3: #{t_caps_forward.1} parent=0 // pred_check_branch
    %9 = sbr.rel (0) target = $region5
  $region4: #{t_caps_forward.1} parent=0 // pred_region
    _
  $region5: #{t_caps_forward.1} parent=0 // pred_fallthru
    _
  // Predicated region
  $region6: #{t_caps_forward.1} parent=0 // pred_check
    _
  $region7: #{t_caps_forward.1} parent=0 // pred_check_branch
    %11 = sbr.rel (0) target = $region9
  $region8: #{t_caps_forward.1} parent=0 // pred_region
    _
  $region9: #{t_caps_forward.1} parent=0 // pred_fallthru
    _
  // Predicated region
  $region10: #{t_caps_forward.1} parent=0 // pred_check
    _
  $region11: #{t_caps_forward.1} parent=0 // pred_check_branch
    %13 = sbr.rel (0) target = $region13
  $region12: #{t_caps_forward.1} parent=0 // pred_region
    _
  $region13: #{t_caps_forward.1} parent=0 // pred_fallthru
    _
  %v14 = vld [vmem:[%s0] sm:$0xff]
  %v15 = vld [vmem:[%s0 + $0x8] sm:$0xff]
  %v16 = vld [vmem:[%s0 + $0x10] sm:$0xff]
  %v17 = vld [vmem:[%s0 + $0x18] sm:$0xff]
  %v18 = vld [vmem:[%s0 + $0x20] sm:$0xff]
  %v19 = vld [vmem:[%s0 + $0x28] sm:$0xff]
  %v20 = vld [vmem:[%s0 + $0x30] sm:$0xff]
  %v21 = vld [vmem:[%s0 + $0x38] sm:$0xff]
  %v22 = vld [vmem:[%s0 + $0x40] sm:$0xff]
  %v23 = vld [vmem:[%s0 + $0x48] sm:$0xff]
  %v24 = vld [vmem:[%s0 + $0x50] sm:$0xff]
  %v25 = vld [vmem:[%s0 + $0x58] sm:$0xff]
  %v26 = vld [vmem:[%s0 + $0x60] sm:$0xff]
  %v27 = vld [vmem:[%s0 + $0x68] sm:$0xff]
  %v28 = vld [vmem:[%s0 + $0x70] sm:$0xff]
  %v29 = vld [vmem:[%s0 + $0x78] sm:$0xff]
  %v30 = vld [vmem:[%s0 + $0x80] sm:$0xff]
  %v31 = vld [vmem:[%s0 + $0x88] sm:$0xff]
  %v32 = vld [vmem:[%s0 + $0x90] sm:$0xff]
  %v33 = vld [vmem:[%s0 + $0x98] sm:$0xff]
  %v34 = vld [vmem:[%s0 + $0xa0] sm:$0xff]
  %v35 = vld [vmem:[%s0 + $0xa8] sm:$0xff]
  %v36 = vld [vmem:[%s0 + $0xb0] sm:$0xff]
  %v37 = vld [vmem:[%s0 + $0xb8] sm:$0xff]
  %v38 = vld [vmem:[%s0 + $0xc0] sm:$0xff]
  %v39 = vld [vmem:[%s0 + $0xc8] sm:$0xff]
  %v40 = vld [vmem:[%s0 + $0xd0] sm:$0xff]
  %v41 = vld [vmem:[%s0 + $0xd8] sm:$0xff]
  %v42 = vld [vmem:[%s0 + $0xe0] sm:$0xff]
  %v43 = vld [vmem:[%s0 + $0xe8] sm:$0xff]
  %v44 = vld [vmem:[%s0 + $0xf0] sm:$0xff]
  %v45 = vld [vmem:[%s0 + $0xf8] sm:$0xff]
  %v46 = vld [vmem:[%s0 + $0x100] sm:$0xff]
  %v47 = vld [vmem:[%s0 + $0x108] sm:$0xff]
  %v48 = vld [vmem:[%s0 + $0x110] sm:$0xff]
  %v49 = vld [vmem:[%s0 + $0x118] sm:$0xff]
  %v50 = vld [vmem:[%s0 + $0x120] sm:$0xff]
  %v51 = vld [vmem:[%s0 + $0x128] sm:$0xff]
  %v52 = vld [vmem:[%s0 + $0x130] sm:$0xff]
  %v53 = vld [vmem:[%s0 + $0x138] sm:$0xff]
  %v54 = vld [vmem:[%s0 + $0x140] sm:$0xff]
  %v55 = vld [vmem:[%s0 + $0x148] sm:$0xff]
  %v56 = vld [vmem:[%s0 + $0x150] sm:$0xff]
  %v57 = vld [vmem:[%s0 + $0x158] sm:$0xff]
  %v58 = vld [vmem:[%s0 + $0x160] sm:$0xff]
  %v59 = vld [vmem:[%s0 + $0x168] sm:$0xff]
  %v60 = vld [vmem:[%s0 + $0x170] sm:$0xff]
  %v61 = vld [vmem:[%s0 + $0x178] sm:$0xff]
  %v62 = vld [vmem:[%s0 + $0x180] sm:$0xff]
  %v63 = vld [vmem:[%s1] sm:$0xff]
  %v64 = vld [vmem:[%s1 + $0x8] sm:$0xff]
  %v65 = vld [vmem:[%s1 + $0x10] sm:$0xff]
  %v66 = vld [vmem:[%s1 + $0x18] sm:$0xff]
  %v67 = vld [vmem:[%s1 + $0x20] sm:$0xf]
  %v68 = vld [vmem:[%s2] sm:$0x1]
  %v70 = vlaneseq
  %v71 = vshrl.u32 %v70, 7
  %v72 = vsub.s32 0, %v71
  %v73 = vrot.slane %v68, %v72
  %vm75 = vcmask 293888
  %v77 = vsel %vm75, %v14, 0
  %v80 = vsel %vm75, %v15, 0
  %v83 = vsel %vm75, %v16, 0
  %v86 = vsel %vm75, %v17, 0
  %v89 = vsel %vm75, %v18, 0
  %v92 = vsel %vm75, %v19, 0
  %v95 = vsel %vm75, %v20, 0
  %v98 = vsel %vm75, %v21, 0
  %v101 = vsel %vm75, %v22, 0
  %v104 = vsel %vm75, %v23, 0
  %v107 = vsel %vm75, %v24, 0
  %v110 = vsel %vm75, %v25, 0
  %v113 = vsel %vm75, %v26, 0
  %v116 = vsel %vm75, %v27, 0
  %v119 = vsel %vm75, %v28, 0
  %v122 = vsel %vm75, %v29, 0
  %v125 = vsel %vm75, %v30, 0
  %v128 = vsel %vm75, %v31, 0
  %v131 = vsel %vm75, %v32, 0
  %v134 = vsel %vm75, %v33, 0
  %v137 = vsel %vm75, %v34, 0
  %v140 = vsel %vm75, %v35, 0
  %v143 = vsel %vm75, %v36, 0
  %v146 = vsel %vm75, %v37, 0
  %v149 = vsel %vm75, %v38, 0
  %v152 = vsel %vm75, %v39, 0
  %v155 = vsel %vm75, %v40, 0
  %v158 = vsel %vm75, %v41, 0
  %v161 = vsel %vm75, %v42, 0
  %v164 = vsel %vm75, %v43, 0
  %v167 = vsel %vm75, %v44, 0
  %v170 = vsel %vm75, %v45, 0
  %v173 = vsel %vm75, %v46, 0
  %v176 = vsel %vm75, %v47, 0
  %v179 = vsel %vm75, %v48, 0
  %v182 = vsel %vm75, %v49, 0
  %v185 = vsel %vm75, %v50, 0
  %v188 = vsel %vm75, %v51, 0
  %v191 = vsel %vm75, %v52, 0
  %v194 = vsel %vm75, %v53, 0
  %v197 = vsel %vm75, %v54, 0
  %v200 = vsel %vm75, %v55, 0
  %v203 = vsel %vm75, %v56, 0
  %v206 = vsel %vm75, %v57, 0
  %v209 = vsel %vm75, %v58, 0
  %v212 = vsel %vm75, %v59, 0
  %v215 = vsel %vm75, %v60, 0
  %v218 = vsel %vm75, %v61, 0
  %v221 = vsel %vm75, %v62, 0
  %vm223 = vcmask 1043456
  %v225 = vsel %vm223, %v67, 0
  %227 = vmatprep.subr.mxu0 0.0
  %228 = vmatpush1.msra.mxu0 %v63
  %229 = vmatprep.subr.mxu0 0.0
  %230 = vmatpush1.msra.mxu0 %v64
  %231 = vmatprep.subr.mxu0 0.0
  %232 = vmatpush1.msra.mxu0 %v65
  %233 = vmatprep.subr.mxu0 0.0
  %234 = vmatpush1.msra.mxu0 %v66
  %235 = vmatprep.subr.mxu0 0.0
  %236 = vmatpush1.msra.mxu0 %v225
  %237 = vmatprep.subr.mxu0 0.0
  %238 = vmatpush1.msra.mxu0 0.0
  %239 = vmatprep.subr.mxu0 0.0
  %240 = vmatpush1.msra.mxu0 0.0
  %241 = vmatprep.subr.mxu0 0.0
  %242 = vmatpush1.msra.mxu0 0.0
  %243 = vmatprep.subr.mxu0 0.0
  %244 = vmatpush1.msra.mxu0 0.0
  %245 = vmatprep.subr.mxu0 0.0
  %246 = vmatpush1.msra.mxu0 0.0
  %247 = vmatprep.subr.mxu0 0.0
  %248 = vmatpush1.msra.mxu0 0.0
  %249 = vmatprep.subr.mxu0 0.0
  %250 = vmatpush1.msra.mxu0 0.0
  %251 = vmatprep.subr.mxu0 0.0
  %252 = vmatpush1.msra.mxu0 0.0
  %253 = vmatprep.subr.mxu0 0.0
  %254 = vmatpush1.msra.mxu0 0.0
  %255 = vmatprep.subr.mxu0 0.0
  %256 = vmatpush1.msra.mxu0 0.0
  %257 = vmatprep.subr.mxu0 0.0
  %258 = vmatpush1.msra.mxu0 0.0
  %259 = vmatprep.subr.mxu0 0.0
  %260 = vmatpush1.msra.mxu0 0.0
  %261 = vmatprep.subr.mxu0 0.0
  %262 = vmatpush1.msra.mxu0 0.0
  %263 = vmatprep.subr.mxu0 0.0
  %264 = vmatpush1.msra.mxu0 0.0
  %265 = vmatprep.subr.mxu0 0.0
  %266 = vmatpush1.msra.mxu0 0.0
  %267 = vmatprep.subr.mxu0 0.0
  %268 = vmatpush1.msra.mxu0 0.0
  %269 = vmatprep.subr.mxu0 0.0
  %270 = vmatpush1.msra.mxu0 0.0
  %271 = vmatprep.subr.mxu0 0.0
  %272 = vmatpush1.msra.mxu0 0.0
  %273 = vmatprep.subr.mxu0 0.0
  %274 = vmatpush1.msra.mxu0 0.0
  %275 = vmatprep.subr.mxu0 0.0
  %276 = vmatpush1.msra.mxu0 0.0
  %277 = vmatprep.subr.mxu0 0.0
  %278 = vmatpush1.msra.mxu0 0.0
  %279 = vmatprep.subr.mxu0 0.0
  %280 = vmatpush1.msra.mxu0 0.0
  %281 = vmatprep.subr.mxu0 0.0
  %282 = vmatpush1.msra.mxu0 0.0
  %283 = vmatprep.subr.mxu0 0.0
  %284 = vmatpush1.msra.mxu0 0.0
  %285 = vmatprep.subr.mxu0 0.0
  %286 = vmatpush1.msra.mxu0 0.0
  %287 = vmatprep.subr.mxu0 0.0
  %288 = vmatpush1.msra.mxu0 0.0
  %289 = vmatprep.subr.mxu0 0.0
  %290 = vmatpush1.msra.mxu0 0.0
  %291 = vmatprep.mubr.f32.mxu0 0.0
  %292 = vmatmul.mubr.f32.gmra.mrb[0].mxu0 %v77
  %v293 = vpop.f32.mrb[0].mxu0
  %v294 = vadd.f32 %v73, %v293
  %v295 = vpop.f32.mrb[0].mxu0
  %296 = vmatprep.mubr.f32.mxu0 0.0
  %297 = vmatmul.mubr.f32.gmra.mrb[0].mxu0 %v80
  %v298 = vpop.f32.mrb[0].mxu0
  %v299 = vadd.f32 %v73, %v298
  %v300 = vpop.f32.mrb[0].mxu0
  %301 = vmatprep.mubr.f32.mxu0 0.0
  %302 = vmatmul.mubr.f32.gmra.mrb[0].mxu0 %v83
  %v303 = vpop.f32.mrb[0].mxu0
  %v304 = vadd.f32 %v73, %v303
  %v305 = vpop.f32.mrb[0].mxu0
  %306 = vmatprep.mubr.f32.mxu0 0.0
  %307 = vmatmul.mubr.f32.gmra.mrb[0].mxu0 %v86
  %v308 = vpop.f32.mrb[0].mxu0
  %v309 = vadd.f32 %v73, %v308
  %v310 = vpop.f32.mrb[0].mxu0
  %311 = vmatprep.mubr.f32.mxu0 0.0
  %312 = vmatmul.mubr.f32.gmra.mrb[0].mxu0 %v89
  %v313 = vpop.f32.mrb[0].mxu0
  %v314 = vadd.f32 %v73, %v313
  %v315 = vpop.f32.mrb[0].mxu0
  %316 = vmatprep.mubr.f32.mxu0 0.0
  %317 = vmatmul.mubr.f32.gmra.mrb[0].mxu0 %v92
  %v318 = vpop.f32.mrb[0].mxu0
  %v319 = vadd.f32 %v73, %v318
  %v320 = vpop.f32.mrb[0].mxu0
  %321 = vmatprep.mubr.f32.mxu0 0.0
  %322 = vmatmul.mubr.f32.gmra.mrb[0].mxu0 %v95
  %v323 = vpop.f32.mrb[0].mxu0
  %v324 = vadd.f32 %v73, %v323
  %v325 = vpop.f32.mrb[0].mxu0
  %326 = vmatprep.mubr.f32.mxu0 0.0
  %327 = vmatmul.mubr.f32.gmra.mrb[0].mxu0 %v98
  %v328 = vpop.f32.mrb[0].mxu0
  %v329 = vadd.f32 %v73, %v328
  %v330 = vpop.f32.mrb[0].mxu0
  %331 = vmatprep.mubr.f32.mxu0 0.0
  %332 = vmatmul.mubr.f32.gmra.mrb[0].mxu0 %v101
  %v333 = vpop.f32.mrb[0].mxu0
  %v334 = vadd.f32 %v73, %v333
  %v335 = vpop.f32.mrb[0].mxu0
  %336 = vmatprep.mubr.f32.mxu0 0.0
  %337 = vmatmul.mubr.f32.gmra.mrb[0].mxu0 %v104
  %v338 = vpop.f32.mrb[0].mxu0
  %v339 = vadd.f32 %v73, %v338
  %v340 = vpop.f32.mrb[0].mxu0
  %341 = vmatprep.mubr.f32.mxu0 0.0
  %342 = vmatmul.mubr.f32.gmra.mrb[0].mxu0 %v107
  %v343 = vpop.f32.mrb[0].mxu0
  %v344 = vadd.f32 %v73, %v343
  %v345 = vpop.f32.mrb[0].mxu0
  %346 = vmatprep.mubr.f32.mxu0 0.0
  %347 = vmatmul.mubr.f32.gmra.mrb[0].mxu0 %v110
  %v348 = vpop.f32.mrb[0].mxu0
  %v349 = vadd.f32 %v73, %v348
  %v350 = vpop.f32.mrb[0].mxu0
  %351 = vmatprep.mubr.f32.mxu0 0.0
  %352 = vmatmul.mubr.f32.gmra.mrb[0].mxu0 %v113
  %v353 = vpop.f32.mrb[0].mxu0
  %v354 = vadd.f32 %v73, %v353
  %v355 = vpop.f32.mrb[0].mxu0
  %356 = vmatprep.mubr.f32.mxu0 0.0
  %357 = vmatmul.mubr.f32.gmra.mrb[0].mxu0 %v116
  %v358 = vpop.f32.mrb[0].mxu0
  %v359 = vadd.f32 %v73, %v358
  %v360 = vpop.f32.mrb[0].mxu0
  %361 = vmatprep.mubr.f32.mxu0 0.0
  %362 = vmatmul.mubr.f32.gmra.mrb[0].mxu0 %v119
  %v363 = vpop.f32.mrb[0].mxu0
  %v364 = vadd.f32 %v73, %v363
  %v365 = vpop.f32.mrb[0].mxu0
  %366 = vmatprep.mubr.f32.mxu0 0.0
  %367 = vmatmul.mubr.f32.gmra.mrb[0].mxu0 %v122
  %v368 = vpop.f32.mrb[0].mxu0
  %v369 = vadd.f32 %v73, %v368
  %v370 = vpop.f32.mrb[0].mxu0
  %371 = vmatprep.mubr.f32.mxu0 0.0
  %372 = vmatmul.mubr.f32.gmra.mrb[0].mxu0 %v125
  %v373 = vpop.f32.mrb[0].mxu0
  %v374 = vadd.f32 %v73, %v373
  %v375 = vpop.f32.mrb[0].mxu0
  %376 = vmatprep.mubr.f32.mxu0 0.0
  %377 = vmatmul.mubr.f32.gmra.mrb[0].mxu0 %v128
  %v378 = vpop.f32.mrb[0].mxu0
  %v379 = vadd.f32 %v73, %v378
  %v380 = vpop.f32.mrb[0].mxu0
  %381 = vmatprep.mubr.f32.mxu0 0.0
  %382 = vmatmul.mubr.f32.gmra.mrb[0].mxu0 %v131
  %v383 = vpop.f32.mrb[0].mxu0
  %v384 = vadd.f32 %v73, %v383
  %v385 = vpop.f32.mrb[0].mxu0
  %386 = vmatprep.mubr.f32.mxu0 0.0
  %387 = vmatmul.mubr.f32.gmra.mrb[0].mxu0 %v134
  %v388 = vpop.f32.mrb[0].mxu0
  %v389 = vadd.f32 %v73, %v388
  %v390 = vpop.f32.mrb[0].mxu0
  %391 = vmatprep.mubr.f32.mxu0 0.0
  %392 = vmatmul.mubr.f32.gmra.mrb[0].mxu0 %v137
  %v393 = vpop.f32.mrb[0].mxu0
  %v394 = vadd.f32 %v73, %v393
  %v395 = vpop.f32.mrb[0].mxu0
  %396 = vmatprep.mubr.f32.mxu0 0.0
  %397 = vmatmul.mubr.f32.gmra.mrb[0].mxu0 %v140
  %v398 = vpop.f32.mrb[0].mxu0
  %v399 = vadd.f32 %v73, %v398
  %v400 = vpop.f32.mrb[0].mxu0
  %401 = vmatprep.mubr.f32.mxu0 0.0
  %402 = vmatmul.mubr.f32.gmra.mrb[0].mxu0 %v143
  %v403 = vpop.f32.mrb[0].mxu0
  %v404 = vadd.f32 %v73, %v403
  %v405 = vpop.f32.mrb[0].mxu0
  %406 = vmatprep.mubr.f32.mxu0 0.0
  %407 = vmatmul.mubr.f32.gmra.mrb[0].mxu0 %v146
  %v408 = vpop.f32.mrb[0].mxu0
  %v409 = vadd.f32 %v73, %v408
  %v410 = vpop.f32.mrb[0].mxu0
  %411 = vmatprep.mubr.f32.mxu0 0.0
  %412 = vmatmul.mubr.f32.gmra.mrb[0].mxu0 %v149
  %v413 = vpop.f32.mrb[0].mxu0
  %v414 = vadd.f32 %v73, %v413
  %v415 = vpop.f32.mrb[0].mxu0
  %416 = vmatprep.mubr.f32.mxu0 0.0
  %417 = vmatmul.mubr.f32.gmra.mrb[0].mxu0 %v152
  %v418 = vpop.f32.mrb[0].mxu0
  %v419 = vadd.f32 %v73, %v418
  %v420 = vpop.f32.mrb[0].mxu0
  %421 = vmatprep.mubr.f32.mxu0 0.0
  %422 = vmatmul.mubr.f32.gmra.mrb[0].mxu0 %v155
  %v423 = vpop.f32.mrb[0].mxu0
  %v424 = vadd.f32 %v73, %v423
  %v425 = vpop.f32.mrb[0].mxu0
  %426 = vmatprep.mubr.f32.mxu0 0.0
  %427 = vmatmul.mubr.f32.gmra.mrb[0].mxu0 %v158
  %v428 = vpop.f32.mrb[0].mxu0
  %v429 = vadd.f32 %v73, %v428
  %v430 = vpop.f32.mrb[0].mxu0
  %431 = vmatprep.mubr.f32.mxu0 0.0
  %432 = vmatmul.mubr.f32.gmra.mrb[0].mxu0 %v161
  %v433 = vpop.f32.mrb[0].mxu0
  %v434 = vadd.f32 %v73, %v433
  %v435 = vpop.f32.mrb[0].mxu0
  %436 = vmatprep.mubr.f32.mxu0 0.0
  %437 = vmatmul.mubr.f32.gmra.mrb[0].mxu0 %v164
  %v438 = vpop.f32.mrb[0].mxu0
  %v439 = vadd.f32 %v73, %v438
  %v440 = vpop.f32.mrb[0].mxu0
  %441 = vmatprep.mubr.f32.mxu0 0.0
  %442 = vmatmul.mubr.f32.gmra.mrb[0].mxu0 %v167
  %v443 = vpop.f32.mrb[0].mxu0
  %v444 = vadd.f32 %v73, %v443
  %v445 = vpop.f32.mrb[0].mxu0
  %446 = vmatprep.mubr.f32.mxu0 0.0
  %447 = vmatmul.mubr.f32.gmra.mrb[0].mxu0 %v170
  %v448 = vpop.f32.mrb[0].mxu0
  %v449 = vadd.f32 %v73, %v448
  %v450 = vpop.f32.mrb[0].mxu0
  %451 = vmatprep.mubr.f32.mxu0 0.0
  %452 = vmatmul.mubr.f32.gmra.mrb[0].mxu0 %v173
  %v453 = vpop.f32.mrb[0].mxu0
  %v454 = vadd.f32 %v73, %v453
  %v455 = vpop.f32.mrb[0].mxu0
  %456 = vmatprep.mubr.f32.mxu0 0.0
  %457 = vmatmul.mubr.f32.gmra.mrb[0].mxu0 %v176
  %v458 = vpop.f32.mrb[0].mxu0
  %v459 = vadd.f32 %v73, %v458
  %v460 = vpop.f32.mrb[0].mxu0
  %461 = vmatprep.mubr.f32.mxu0 0.0
  %462 = vmatmul.mubr.f32.gmra.mrb[0].mxu0 %v179
  %v463 = vpop.f32.mrb[0].mxu0
  %v464 = vadd.f32 %v73, %v463
  %v465 = vpop.f32.mrb[0].mxu0
  %466 = vmatprep.mubr.f32.mxu0 0.0
  %467 = vmatmul.mubr.f32.gmra.mrb[0].mxu0 %v182
  %v468 = vpop.f32.mrb[0].mxu0
  %v469 = vadd.f32 %v73, %v468
  %v470 = vpop.f32.mrb[0].mxu0
  %471 = vmatprep.mubr.f32.mxu0 0.0
  %472 = vmatmul.mubr.f32.gmra.mrb[0].mxu0 %v185
  %v473 = vpop.f32.mrb[0].mxu0
  %v474 = vadd.f32 %v73, %v473
  %v475 = vpop.f32.mrb[0].mxu0
  %476 = vmatprep.mubr.f32.mxu0 0.0
  %477 = vmatmul.mubr.f32.gmra.mrb[0].mxu0 %v188
  %v478 = vpop.f32.mrb[0].mxu0
  %v479 = vadd.f32 %v73, %v478
  %v480 = vpop.f32.mrb[0].mxu0
  %481 = vmatprep.mubr.f32.mxu0 0.0
  %482 = vmatmul.mubr.f32.gmra.mrb[0].mxu0 %v191
  %v483 = vpop.f32.mrb[0].mxu0
  %v484 = vadd.f32 %v73, %v483
  %v485 = vpop.f32.mrb[0].mxu0
  %486 = vmatprep.mubr.f32.mxu0 0.0
  %487 = vmatmul.mubr.f32.gmra.mrb[0].mxu0 %v194
  %v488 = vpop.f32.mrb[0].mxu0
  %v489 = vadd.f32 %v73, %v488
  %v490 = vpop.f32.mrb[0].mxu0
  %491 = vmatprep.mubr.f32.mxu0 0.0
  %492 = vmatmul.mubr.f32.gmra.mrb[0].mxu0 %v197
  %v493 = vpop.f32.mrb[0].mxu0
  %v494 = vadd.f32 %v73, %v493
  %v495 = vpop.f32.mrb[0].mxu0
  %496 = vmatprep.mubr.f32.mxu0 0.0
  %497 = vmatmul.mubr.f32.gmra.mrb[0].mxu0 %v200
  %v498 = vpop.f32.mrb[0].mxu0
  %v499 = vadd.f32 %v73, %v498
  %v500 = vpop.f32.mrb[0].mxu0
  %501 = vmatprep.mubr.f32.mxu0 0.0
  %502 = vmatmul.mubr.f32.gmra.mrb[0].mxu0 %v203
  %v503 = vpop.f32.mrb[0].mxu0
  %v504 = vadd.f32 %v73, %v503
  %v505 = vpop.f32.mrb[0].mxu0
  %506 = vmatprep.mubr.f32.mxu0 0.0
  %507 = vmatmul.mubr.f32.gmra.mrb[0].mxu0 %v206
  %v508 = vpop.f32.mrb[0].mxu0
  %v509 = vadd.f32 %v73, %v508
  %v510 = vpop.f32.mrb[0].mxu0
  %511 = vmatprep.mubr.f32.mxu0 0.0
  %512 = vmatmul.mubr.f32.gmra.mrb[0].mxu0 %v209
  %v513 = vpop.f32.mrb[0].mxu0
  %v514 = vadd.f32 %v73, %v513
  %v515 = vpop.f32.mrb[0].mxu0
  %516 = vmatprep.mubr.f32.mxu0 0.0
  %517 = vmatmul.mubr.f32.gmra.mrb[0].mxu0 %v212
  %v518 = vpop.f32.mrb[0].mxu0
  %v519 = vadd.f32 %v73, %v518
  %v520 = vpop.f32.mrb[0].mxu0
  %521 = vmatprep.mubr.f32.mxu0 0.0
  %522 = vmatmul.mubr.f32.gmra.mrb[0].mxu0 %v215
  %v523 = vpop.f32.mrb[0].mxu0
  %v524 = vadd.f32 %v73, %v523
  %v525 = vpop.f32.mrb[0].mxu0
  %526 = vmatprep.mubr.f32.mxu0 0.0
  %527 = vmatmul.mubr.f32.gmra.mrb[0].mxu0 %v218
  %v528 = vpop.f32.mrb[0].mxu0
  %v529 = vadd.f32 %v73, %v528
  %v530 = vpop.f32.mrb[0].mxu0
  %531 = vmatprep.mubr.f32.mxu0 0.0
  %532 = vmatmul.mubr.f32.gmra.mrb[0].mxu0 %v221
  %v533 = vpop.f32.mrb[0].mxu0
  %v534 = vadd.f32 %v73, %v533
  %v535 = vpop.f32.mrb[0].mxu0
  %536 = vdwg.mxu0
  %v537 = vlaneseq
  %v538 = vand.u32 %v537, 127
  %vm539 = vcmp.ge.s32.totalorder %v538, 18
  %v540 = vxor.u32 %v294, 2147483648
  %v541 = vxor.u32 %v299, 2147483648
  %v542 = vxor.u32 %v304, 2147483648
  %v543 = vxor.u32 %v309, 2147483648
  %v544 = vxor.u32 %v314, 2147483648
  %v545 = vxor.u32 %v319, 2147483648
  %v546 = vxor.u32 %v324, 2147483648
  %v547 = vxor.u32 %v329, 2147483648
  %v548 = vxor.u32 %v334, 2147483648
  %v549 = vxor.u32 %v339, 2147483648
  %v550 = vxor.u32 %v344, 2147483648
  %v551 = vxor.u32 %v349, 2147483648
  %v552 = vxor.u32 %v354, 2147483648
  %v553 = vxor.u32 %v359, 2147483648
  %v554 = vxor.u32 %v364, 2147483648
  %v555 = vxor.u32 %v369, 2147483648
  %v556 = vxor.u32 %v374, 2147483648
  %v557 = vxor.u32 %v379, 2147483648
  %v558 = vxor.u32 %v384, 2147483648
  %v559 = vxor.u32 %v389, 2147483648
  %v560 = vxor.u32 %v394, 2147483648
  %v561 = vxor.u32 %v399, 2147483648
  %v562 = vxor.u32 %v404, 2147483648
  %v563 = vxor.u32 %v409, 2147483648
  %v564 = vxor.u32 %v414, 2147483648
  %v565 = vxor.u32 %v419, 2147483648
  %v566 = vxor.u32 %v424, 2147483648
  %v567 = vxor.u32 %v429, 2147483648
  %v568 = vxor.u32 %v434, 2147483648
  %v569 = vxor.u32 %v439, 2147483648
  %v570 = vxor.u32 %v444, 2147483648
  %v571 = vxor.u32 %v449, 2147483648
  %v572 = vxor.u32 %v454, 2147483648
  %v573 = vxor.u32 %v459, 2147483648
  %v574 = vxor.u32 %v464, 2147483648
  %v575 = vxor.u32 %v469, 2147483648
  %v576 = vxor.u32 %v474, 2147483648
  %v577 = vxor.u32 %v479, 2147483648
  %v578 = vxor.u32 %v484, 2147483648
  %v579 = vxor.u32 %v489, 2147483648
  %v580 = vxor.u32 %v494, 2147483648
  %v581 = vxor.u32 %v499, 2147483648
  %v582 = vxor.u32 %v504, 2147483648
  %v583 = vxor.u32 %v509, 2147483648
  %v584 = vxor.u32 %v514, 2147483648
  %v585 = vxor.u32 %v519, 2147483648
  %v586 = vxor.u32 %v524, 2147483648
  %v587 = vxor.u32 %v529, 2147483648
  %v588 = vxor.u32 %v534, 2147483648
  %v589 = vmul.f32 %v540, 1.442695
  %v590 = vpow.pop %v589
  %v591 = vmul.f32 %v541, 1.442695
  %v592 = vpow.pop %v591
  %v593 = vmul.f32 %v542, 1.442695
  %v594 = vpow.pop %v593
  %v595 = vmul.f32 %v543, 1.442695
  %v596 = vpow.pop %v595
  %v597 = vmul.f32 %v544, 1.442695
  %v598 = vpow.pop %v597
  %v599 = vmul.f32 %v545, 1.442695
  %v600 = vpow.pop %v599
  %v601 = vmul.f32 %v546, 1.442695
  %v602 = vpow.pop %v601
  %v603 = vmul.f32 %v547, 1.442695
  %v604 = vpow.pop %v603
  %v605 = vmul.f32 %v548, 1.442695
  %v606 = vpow.pop %v605
  %v607 = vmul.f32 %v549, 1.442695
  %v608 = vpow.pop %v607
  %v609 = vmul.f32 %v550, 1.442695
  %v610 = vpow.pop %v609
  %v611 = vmul.f32 %v551, 1.442695
  %v612 = vpow.pop %v611
  %v613 = vmul.f32 %v552, 1.442695
  %v614 = vpow.pop %v613
  %v615 = vmul.f32 %v553, 1.442695
  %v616 = vpow.pop %v615
  %v617 = vmul.f32 %v554, 1.442695
  %v618 = vpow.pop %v617
  %v619 = vmul.f32 %v555, 1.442695
  %v620 = vpow.pop %v619
  %v621 = vmul.f32 %v556, 1.442695
  %v622 = vpow.pop %v621
  %v623 = vmul.f32 %v557, 1.442695
  %v624 = vpow.pop %v623
  %v625 = vmul.f32 %v558, 1.442695
  %v626 = vpow.pop %v625
  %v627 = vmul.f32 %v559, 1.442695
  %v628 = vpow.pop %v627
  %v629 = vmul.f32 %v560, 1.442695
  %v630 = vpow.pop %v629
  %v631 = vmul.f32 %v561, 1.442695
  %v632 = vpow.pop %v631
  %v633 = vmul.f32 %v562, 1.442695
  %v634 = vpow.pop %v633
  %v635 = vmul.f32 %v563, 1.442695
  %v636 = vpow.pop %v635
  %v637 = vmul.f32 %v564, 1.442695
  %v638 = vpow.pop %v637
  %v639 = vmul.f32 %v565, 1.442695
  %v640 = vpow.pop %v639
  %v641 = vmul.f32 %v566, 1.442695
  %v642 = vpow.pop %v641
  %v643 = vmul.f32 %v567, 1.442695
  %v644 = vpow.pop %v643
  %v645 = vmul.f32 %v568, 1.442695
  %v646 = vpow.pop %v645
  %v647 = vmul.f32 %v569, 1.442695
  %v648 = vpow.pop %v647
  %v649 = vmul.f32 %v570, 1.442695
  %v650 = vpow.pop %v649
  %v651 = vmul.f32 %v571, 1.442695
  %v652 = vpow.pop %v651
  %v653 = vmul.f32 %v572, 1.442695
  %v654 = vpow.pop %v653
  %v655 = vmul.f32 %v573, 1.442695
  %v656 = vpow.pop %v655
  %v657 = vmul.f32 %v574, 1.442695
  %v658 = vpow.pop %v657
  %v659 = vmul.f32 %v575, 1.442695
  %v660 = vpow.pop %v659
  %v661 = vmul.f32 %v576, 1.442695
  %v662 = vpow.pop %v661
  %v663 = vmul.f32 %v577, 1.442695
  %v664 = vpow.pop %v663
  %v665 = vmul.f32 %v578, 1.442695
  %v666 = vpow.pop %v665
  %v667 = vmul.f32 %v579, 1.442695
  %v668 = vpow.pop %v667
  %v669 = vmul.f32 %v580, 1.442695
  %v670 = vpow.pop %v669
  %v671 = vmul.f32 %v581, 1.442695
  %v672 = vpow.pop %v671
  %v673 = vmul.f32 %v582, 1.442695
  %v674 = vpow.pop %v673
  %v675 = vmul.f32 %v583, 1.442695
  %v676 = vpow.pop %v675
  %v677 = vmul.f32 %v584, 1.442695
  %v678 = vpow.pop %v677
  %v679 = vmul.f32 %v585, 1.442695
  %v680 = vpow.pop %v679
  %v681 = vmul.f32 %v586, 1.442695
  %v682 = vpow.pop %v681
  %v683 = vmul.f32 %v587, 1.442695
  %v684 = vpow.pop %v683
  %v685 = vmul.f32 %v588, 1.442695
  %v686 = vpow.pop %v685
  %v687 = vadd.f32 %v590, 1.0
  %v688 = vadd.f32 %v592, 1.0
  %v689 = vadd.f32 %v594, 1.0
  %v690 = vadd.f32 %v596, 1.0
  %v691 = vadd.f32 %v598, 1.0
  %v692 = vadd.f32 %v600, 1.0
  %v693 = vadd.f32 %v602, 1.0
  %v694 = vadd.f32 %v604, 1.0
  %v695 = vadd.f32 %v606, 1.0
  %v696 = vadd.f32 %v608, 1.0
  %v697 = vadd.f32 %v610, 1.0
  %v698 = vadd.f32 %v612, 1.0
  %v699 = vadd.f32 %v614, 1.0
  %v700 = vadd.f32 %v616, 1.0
  %v701 = vadd.f32 %v618, 1.0
  %v702 = vadd.f32 %v620, 1.0
  %v703 = vadd.f32 %v622, 1.0
  %v704 = vadd.f32 %v624, 1.0
  %v705 = vadd.f32 %v626, 1.0
  %v706 = vadd.f32 %v628, 1.0
  %v707 = vadd.f32 %v630, 1.0
  %v708 = vadd.f32 %v632, 1.0
  %v709 = vadd.f32 %v634, 1.0
  %v710 = vadd.f32 %v636, 1.0
  %v711 = vadd.f32 %v638, 1.0
  %v712 = vadd.f32 %v640, 1.0
  %v713 = vadd.f32 %v642, 1.0
  %v714 = vadd.f32 %v644, 1.0
  %v715 = vadd.f32 %v646, 1.0
  %v716 = vadd.f32 %v648, 1.0
  %v717 = vadd.f32 %v650, 1.0
  %v718 = vadd.f32 %v652, 1.0
  %v719 = vadd.f32 %v654, 1.0
  %v720 = vadd.f32 %v656, 1.0
  %v721 = vadd.f32 %v658, 1.0
  %v722 = vadd.f32 %v660, 1.0
  %v723 = vadd.f32 %v662, 1.0
  %v724 = vadd.f32 %v664, 1.0
  %v725 = vadd.f32 %v666, 1.0
  %v726 = vadd.f32 %v668, 1.0
  %v727 = vadd.f32 %v670, 1.0
  %v728 = vadd.f32 %v672, 1.0
  %v729 = vadd.f32 %v674, 1.0
  %v730 = vadd.f32 %v676, 1.0
  %v731 = vadd.f32 %v678, 1.0
  %v732 = vadd.f32 %v680, 1.0
  %v733 = vadd.f32 %v682, 1.0
  %v734 = vadd.f32 %v684, 1.0
  %v735 = vadd.f32 %v686, 1.0
  %v736 = vrcp.pop %v687
  %v737 = vmul.f32 1.0, %v736
  %v738 = vrcp.pop %v688
  %v739 = vmul.f32 1.0, %v738
  %v740 = vrcp.pop %v689
  %v741 = vmul.f32 1.0, %v740
  %v742 = vrcp.pop %v690
  %v743 = vmul.f32 1.0, %v742
  %v744 = vrcp.pop %v691
  %v745 = vmul.f32 1.0, %v744
  %v746 = vrcp.pop %v692
  %v747 = vmul.f32 1.0, %v746
  %v748 = vrcp.pop %v693
  %v749 = vmul.f32 1.0, %v748
  %v750 = vrcp.pop %v694
  %v751 = vmul.f32 1.0, %v750
  %v752 = vrcp.pop %v695
  %v753 = vmul.f32 1.0, %v752
  %v754 = vrcp.pop %v696
  %v755 = vmul.f32 1.0, %v754
  %v756 = vrcp.pop %v697
  %v757 = vmul.f32 1.0, %v756
  %v758 = vrcp.pop %v698
  %v759 = vmul.f32 1.0, %v758
  %v760 = vrcp.pop %v699
  %v761 = vmul.f32 1.0, %v760
  %v762 = vrcp.pop %v700
  %v763 = vmul.f32 1.0, %v762
  %v764 = vrcp.pop %v701
  %v765 = vmul.f32 1.0, %v764
  %v766 = vrcp.pop %v702
  %v767 = vmul.f32 1.0, %v766
  %v768 = vrcp.pop %v703
  %v769 = vmul.f32 1.0, %v768
  %v770 = vrcp.pop %v704
  %v771 = vmul.f32 1.0, %v770
  %v772 = vrcp.pop %v705
  %v773 = vmul.f32 1.0, %v772
  %v774 = vrcp.pop %v706
  %v775 = vmul.f32 1.0, %v774
  %v776 = vrcp.pop %v707
  %v777 = vmul.f32 1.0, %v776
  %v778 = vrcp.pop %v708
  %v779 = vmul.f32 1.0, %v778
  %v780 = vrcp.pop %v709
  %v781 = vmul.f32 1.0, %v780
  %v782 = vrcp.pop %v710
  %v783 = vmul.f32 1.0, %v782
  %v784 = vrcp.pop %v711
  %v785 = vmul.f32 1.0, %v784
  %v786 = vrcp.pop %v712
  %v787 = vmul.f32 1.0, %v786
  %v788 = vrcp.pop %v713
  %v789 = vmul.f32 1.0, %v788
  %v790 = vrcp.pop %v714
  %v791 = vmul.f32 1.0, %v790
  %v792 = vrcp.pop %v715
  %v793 = vmul.f32 1.0, %v792
  %v794 = vrcp.pop %v716
  %v795 = vmul.f32 1.0, %v794
  %v796 = vrcp.pop %v717
  %v797 = vmul.f32 1.0, %v796
  %v798 = vrcp.pop %v718
  %v799 = vmul.f32 1.0, %v798
  %v800 = vrcp.pop %v719
  %v801 = vmul.f32 1.0, %v800
  %v802 = vrcp.pop %v720
  %v803 = vmul.f32 1.0, %v802
  %v804 = vrcp.pop %v721
  %v805 = vmul.f32 1.0, %v804
  %v806 = vrcp.pop %v722
  %v807 = vmul.f32 1.0, %v806
  %v808 = vrcp.pop %v723
  %v809 = vmul.f32 1.0, %v808
  %v810 = vrcp.pop %v724
  %v811 = vmul.f32 1.0, %v810
  %v812 = vrcp.pop %v725
  %v813 = vmul.f32 1.0, %v812
  %v814 = vrcp.pop %v726
  %v815 = vmul.f32 1.0, %v814
  %v816 = vrcp.pop %v727
  %v817 = vmul.f32 1.0, %v816
  %v818 = vrcp.pop %v728
  %v819 = vmul.f32 1.0, %v818
  %v820 = vrcp.pop %v729
  %v821 = vmul.f32 1.0, %v820
  %v822 = vrcp.pop %v730
  %v823 = vmul.f32 1.0, %v822
  %v824 = vrcp.pop %v731
  %v825 = vmul.f32 1.0, %v824
  %v826 = vrcp.pop %v732
  %v827 = vmul.f32 1.0, %v826
  %v828 = vrcp.pop %v733
  %v829 = vmul.f32 1.0, %v828
  %v830 = vrcp.pop %v734
  %v831 = vmul.f32 1.0, %v830
  %v832 = vrcp.pop %v735
  %v833 = vmul.f32 1.0, %v832
  %v834 = vsel %vm539, %v737, %v294
  %v835 = vsel %vm539, %v739, %v299
  %v836 = vsel %vm539, %v741, %v304
  %v837 = vsel %vm539, %v743, %v309
  %v838 = vsel %vm539, %v745, %v314
  %v839 = vsel %vm539, %v747, %v319
  %v840 = vsel %vm539, %v749, %v324
  %v841 = vsel %vm539, %v751, %v329
  %v842 = vsel %vm539, %v753, %v334
  %v843 = vsel %vm539, %v755, %v339
  %v844 = vsel %vm539, %v757, %v344
  %v845 = vsel %vm539, %v759, %v349
  %v846 = vsel %vm539, %v761, %v354
  %v847 = vsel %vm539, %v763, %v359
  %v848 = vsel %vm539, %v765, %v364
  %v849 = vsel %vm539, %v767, %v369
  %v850 = vsel %vm539, %v769, %v374
  %v851 = vsel %vm539, %v771, %v379
  %v852 = vsel %vm539, %v773, %v384
  %v853 = vsel %vm539, %v775, %v389
  %v854 = vsel %vm539, %v777, %v394
  %v855 = vsel %vm539, %v779, %v399
  %v856 = vsel %vm539, %v781, %v404
  %v857 = vsel %vm539, %v783, %v409
  %v858 = vsel %vm539, %v785, %v414
  %v859 = vsel %vm539, %v787, %v419
  %v860 = vsel %vm539, %v789, %v424
  %v861 = vsel %vm539, %v791, %v429
  %v862 = vsel %vm539, %v793, %v434
  %v863 = vsel %vm539, %v795, %v439
  %v864 = vsel %vm539, %v797, %v444
  %v865 = vsel %vm539, %v799, %v449
  %v866 = vsel %vm539, %v801, %v454
  %v867 = vsel %vm539, %v803, %v459
  %v868 = vsel %vm539, %v805, %v464
  %v869 = vsel %vm539, %v807, %v469
  %v870 = vsel %vm539, %v809, %v474
  %v871 = vsel %vm539, %v811, %v479
  %v872 = vsel %vm539, %v813, %v484
  %v873 = vsel %vm539, %v815, %v489
  %v874 = vsel %vm539, %v817, %v494
  %v875 = vsel %vm539, %v819, %v499
  %v876 = vsel %vm539, %v821, %v504
  %v877 = vsel %vm539, %v823, %v509
  %v878 = vsel %vm539, %v825, %v514
  %v879 = vsel %vm539, %v827, %v519
  %v880 = vsel %vm539, %v829, %v524
  %v881 = vsel %vm539, %v831, %v529
  %v882 = vsel %vm539, %v833, %v534
  %883 = vst [vmem:[%s3] sm:$0xff] %v834
  %884 = vst [vmem:[%s3 + $0x8] sm:$0xff] %v835
  %885 = vst [vmem:[%s3 + $0x10] sm:$0xff] %v836
  %886 = vst [vmem:[%s3 + $0x18] sm:$0xff] %v837
  %887 = vst [vmem:[%s3 + $0x20] sm:$0xff] %v838
  %888 = vst [vmem:[%s3 + $0x28] sm:$0xff] %v839
  %889 = vst [vmem:[%s3 + $0x30] sm:$0xff] %v840
  %890 = vst [vmem:[%s3 + $0x38] sm:$0xff] %v841
  %891 = vst [vmem:[%s3 + $0x40] sm:$0xff] %v842
  %892 = vst [vmem:[%s3 + $0x48] sm:$0xff] %v843
  %893 = vst [vmem:[%s3 + $0x50] sm:$0xff] %v844
  %894 = vst [vmem:[%s3 + $0x58] sm:$0xff] %v845
  %895 = vst [vmem:[%s3 + $0x60] sm:$0xff] %v846
  %896 = vst [vmem:[%s3 + $0x68] sm:$0xff] %v847
  %897 = vst [vmem:[%s3 + $0x70] sm:$0xff] %v848
  %898 = vst [vmem:[%s3 + $0x78] sm:$0xff] %v849
  %899 = vst [vmem:[%s3 + $0x80] sm:$0xff] %v850
  %900 = vst [vmem:[%s3 + $0x88] sm:$0xff] %v851
  %901 = vst [vmem:[%s3 + $0x90] sm:$0xff] %v852
  %902 = vst [vmem:[%s3 + $0x98] sm:$0xff] %v853
  %903 = vst [vmem:[%s3 + $0xa0] sm:$0xff] %v854
  %904 = vst [vmem:[%s3 + $0xa8] sm:$0xff] %v855
  %905 = vst [vmem:[%s3 + $0xb0] sm:$0xff] %v856
  %906 = vst [vmem:[%s3 + $0xb8] sm:$0xff] %v857
  %907 = vst [vmem:[%s3 + $0xc0] sm:$0xff] %v858
  %908 = vst [vmem:[%s3 + $0xc8] sm:$0xff] %v859
  %909 = vst [vmem:[%s3 + $0xd0] sm:$0xff] %v860
  %910 = vst [vmem:[%s3 + $0xd8] sm:$0xff] %v861
  %911 = vst [vmem:[%s3 + $0xe0] sm:$0xff] %v862
  %912 = vst [vmem:[%s3 + $0xe8] sm:$0xff] %v863
  %913 = vst [vmem:[%s3 + $0xf0] sm:$0xff] %v864
  %914 = vst [vmem:[%s3 + $0xf8] sm:$0xff] %v865
  %915 = vst [vmem:[%s3 + $0x100] sm:$0xff] %v866
  %916 = vst [vmem:[%s3 + $0x108] sm:$0xff] %v867
  %917 = vst [vmem:[%s3 + $0x110] sm:$0xff] %v868
  %918 = vst [vmem:[%s3 + $0x118] sm:$0xff] %v869
  %919 = vst [vmem:[%s3 + $0x120] sm:$0xff] %v870
  %920 = vst [vmem:[%s3 + $0x128] sm:$0xff] %v871
  %921 = vst [vmem:[%s3 + $0x130] sm:$0xff] %v872
  %922 = vst [vmem:[%s3 + $0x138] sm:$0xff] %v873
  %923 = vst [vmem:[%s3 + $0x140] sm:$0xff] %v874
  %924 = vst [vmem:[%s3 + $0x148] sm:$0xff] %v875
  %925 = vst [vmem:[%s3 + $0x150] sm:$0xff] %v876
  %926 = vst [vmem:[%s3 + $0x158] sm:$0xff] %v877
  %927 = vst [vmem:[%s3 + $0x160] sm:$0xff] %v878
  %928 = vst [vmem:[%s3 + $0x168] sm:$0xff] %v879
  %929 = vst [vmem:[%s3 + $0x170] sm:$0xff] %v880
  %930 = vst [vmem:[%s3 + $0x178] sm:$0xff] %v881
  %931 = vst [vmem:[%s3 + $0x180] sm:$0xff] %v882
  // Predicated region
  $region14: #{t_caps_forward.1} parent=0 // pred_check
    _
  $region15: #{t_caps_forward.1} parent=0 // pred_check_branch
    %933 = sbr.rel (0) target = $region17
  $region16: #{t_caps_forward.1} parent=0 // pred_region
    _
  $region17: #{t_caps_forward.1} parent=0 // pred_fallthru
    _
  // Predicated region
  $region18: #{t_caps_forward.1} parent=0 // pred_check
    _
  $region19: #{t_caps_forward.1} parent=0 // pred_check_branch
    %935 = sbr.rel (0) target = $region21
  $region20: #{t_caps_forward.1} parent=0 // pred_region
    _
  $region21: #{t_caps_forward.1} parent=0 // pred_fallthru
    _

</llo_original>
